<compile_context>
chip_gen: v7x
topology: tpu7x:2x2x1
jax: 0.10.0
libtpu: 0.0.40
codegen_flags: <defaults>
</compile_context>

<pallas_src>
import math

import jax
import jax.numpy as jnp
from jax.experimental import pallas as pl
from jax.experimental.pallas import tpu as pltpu


def _round_up(n, m):
    return ((n + m - 1) // m) * m


def mlp_kernel(x_ref, w1_ref, b1_ref, w2_ref, b2_ref, w3_ref, b3_ref, y_ref):
    # In-kernel cast (avoids a wrapper-side astype pass over x in HBM).
    x = x_ref[...].astype(w1_ref.dtype)
    # fc1 + tanh : MXU matmul, f32 accumulation, f32 bias add, f32 tanh.
    h1 = jnp.tanh(
        jnp.dot(x, w1_ref[...], preferred_element_type=jnp.float32) + b1_ref[...]
    )
    # fc2 + tanh.
    h2 = jnp.tanh(
        jnp.dot(h1.astype(w2_ref.dtype), w2_ref[...],
                preferred_element_type=jnp.float32) + b2_ref[...]
    )
    # fc3 (out_features == 1): VPU multiply + lane (XLU) reduction instead of an
    # MXU matmul against a zero-padded 128-wide W3.  Result block is (tile_b, 1).
    y = jnp.sum(h2 * w3_ref[...].astype(jnp.float32), axis=-1, keepdims=True)
    y_ref[...] = (y + b3_ref[...]).astype(y_ref.dtype)


def mlpnet_forward(x, params, *, tile_b=2048, compute_dtype=jnp.float32):
    """x: (B, num_features). Returns (B, 1) float32, matching MLPnet.forward."""
    B, num_features = x.shape
    w1 = params["w1"].astype(compute_dtype)
    w2 = params["w2"].astype(compute_dtype)
    num_hiddens = params["w3"].shape[0]
    w3_row = params["w3"].reshape(1, num_hiddens).astype(compute_dtype)
    b1 = params["b1"].astype(jnp.float32)
    b2 = params["b2"].astype(jnp.float32)
    b3 = params["b3"].reshape(1, 1).astype(jnp.float32)

    # Batch tile: multiple of the sublane granularity of the HBM-side x dtype,
    # capped near B/2 so the grid has >= 2 steps (both v7x TCs get work for
    # small B); for large B the cap is inactive and tile_b (2048) is used.
    sub = 16 if jnp.dtype(x.dtype).itemsize < 4 else 8
    cap = _round_up(pl.cdiv(B, 2), sub)
    tile = max(sub, min(_round_up(tile_b, sub), cap))
    grid = (pl.cdiv(B, tile),)

    def const2d(arr):
        # Whole-array block, same block index every step -> stays VMEM-resident.
        return pl.BlockSpec(arr.shape, lambda i: (0, 0))

    y = pl.pallas_call(
        mlp_kernel,
        out_shape=jax.ShapeDtypeStruct((B, 1), jnp.float32),
        grid=grid,
        in_specs=[
            pl.BlockSpec((tile, num_features), lambda i: (i, 0)),  # x tile
            const2d(w1), const2d(b1),
            const2d(w2), const2d(b2),
            const2d(w3_row), const2d(b3),
        ],
        # Last dim 1 equals the full output dim -> legal block; partial last
        # batch block is clipped on write, so no wrapper-side batch padding.
        out_specs=pl.BlockSpec((tile, 1), lambda i: (i, 0)),
        compiler_params=pltpu.CompilerParams(
            dimension_semantics=("parallel",),
        ),
    )(x, w1, b1, w2, b2, w3_row, b3)
    return y


def init_mlpnet_params(key, num_features, num_hiddens):
    """torch.nn.Linear-style init: U(-1/sqrt(fan_in), 1/sqrt(fan_in)).
    W1/W2 stored as (in_features, out_features); W3 as (num_hiddens, 1)."""
    def linear(key, fan_in, fan_out):
        kw, kb = jax.random.split(key)
        bound = 1.0 / math.sqrt(fan_in)
        w = jax.random.uniform(kw, (fan_in, fan_out), jnp.float32, -bound, bound)
        b = jax.random.uniform(kb, (1, fan_out), jnp.float32, -bound, bound)
        return w, b

    k1, k2, k3 = jax.random.split(key, 3)
    w1, b1 = linear(k1, num_features, 2 * num_hiddens)
    w2, b2 = linear(k2, 2 * num_hiddens, num_hiddens)
    w3, b3 = linear(k3, num_hiddens, 1)
    return {"w1": w1, "b1": b1, "w2": w2, "b2": b2, "w3": w3, "b3": b3}


def mlpnet_reference(x, p):
    h1 = jnp.tanh(x @ p["w1"] + p["b1"])
    h2 = jnp.tanh(h1 @ p["w2"] + p["b2"])
    return h2 @ p["w3"] + p["b3"]


if __name__ == "__main__":
    num_features = 32
    num_hiddens = 32

    key = jax.random.PRNGKey(0)
    kx, kp, kx2 = jax.random.split(key, 3)
    params = init_mlpnet_params(kp, num_features, num_hiddens)

    # --- small batch, f32, grid of 2 tiny tiles (tight tolerance) ---
    batch = 16
    x = jax.random.normal(kx, (batch, num_features), jnp.float32)
    y = mlpnet_forward(x, params)
    jax.block_until_ready(y)
    y_ref = mlpnet_reference(x, params)
    assert y.shape == (batch, 1)
    assert jnp.allclose(y, y_ref, atol=1e-5, rtol=1e-5)

    # --- larger batch: multiple 2048-row tiles + clipped partial last tile ---
    batch2 = 5000
    x2 = jax.random.normal(kx2, (batch2, num_features), jnp.float32)
    y2 = mlpnet_forward(x2, params)  # tile_b=2048 -> grid=3, last block partial
    jax.block_until_ready(y2)
    y2_ref = mlpnet_reference(x2, params)
    assert y2.shape == (batch2, 1)
    assert jnp.allclose(y2, y2_ref, atol=1e-5, rtol=1e-5)

    # --- bf16 storage/matmul path (f32 accumulation/bias/tanh) for v6e/v7x ---
    batch3 = 1000
    x3 = jax.random.normal(jax.random.fold_in(key, 7), (batch3, num_features),
                           jnp.float32)
    y3 = mlpnet_forward(x3, params, compute_dtype=jnp.bfloat16)
    jax.block_until_ready(y3)
    y3_ref = mlpnet_reference(x3, params)
    assert y3.shape == (batch3, 1)
    assert jnp.allclose(y3, y3_ref, atol=5e-2, rtol=5e-2)

    print("KERNEL_OK")
</pallas_src>

<mosaic_0001>
module attributes {stable_mosaic.version = 11 : i64} {
  func.func @mlp_kernel(%arg0: i32, %arg1: memref<8x32xf32, #tpu.memory_space<vmem>>, %arg2: memref<32x64xf32, #tpu.memory_space<vmem>>, %arg3: memref<1x64xf32, #tpu.memory_space<vmem>>, %arg4: memref<64x32xf32, #tpu.memory_space<vmem>>, %arg5: memref<1x32xf32, #tpu.memory_space<vmem>>, %arg6: memref<1x32xf32, #tpu.memory_space<vmem>>, %arg7: memref<1x1xf32, #tpu.memory_space<vmem>>, %arg8: memref<8x1xf32, #tpu.memory_space<vmem>>) attributes {dimension_semantics = [#tpu.dimension_semantics<parallel>], iteration_bounds = array<i64: 2>, scalar_prefetch = 0 : i64, scratch_operands = 0 : i64, tpu.core_type = #tpu.core_type<tc>, window_params = [{transform_indices = @transform_0, window_bounds = array<i64: 8, 32>}, {pipeline_mode = #tpu.pipeline_mode<synchronous>, transform_indices = @transform_1, window_bounds = array<i64: 32, 64>}, {pipeline_mode = #tpu.pipeline_mode<synchronous>, transform_indices = @transform_2, window_bounds = array<i64: 1, 64>}, {pipeline_mode = #tpu.pipeline_mode<synchronous>, transform_indices = @transform_3, window_bounds = array<i64: 64, 32>}, {pipeline_mode = #tpu.pipeline_mode<synchronous>, transform_indices = @transform_4, window_bounds = array<i64: 1, 32>}, {pipeline_mode = #tpu.pipeline_mode<synchronous>, transform_indices = @transform_5, window_bounds = array<i64: 1, 32>}, {pipeline_mode = #tpu.pipeline_mode<synchronous>, transform_indices = @transform_6, window_bounds = array<i64: 1, 1>}, {transform_indices = @transform_7, window_bounds = array<i64: 8, 1>}]} {
    %c0 = arith.constant 0 : index
    %c0_0 = arith.constant 0 : index
    %0 = vector.load %arg1[%c0, %c0_0] : memref<8x32xf32, #tpu.memory_space<vmem>>, vector<8x32xf32>
    %c0_1 = arith.constant 0 : index
    %c0_2 = arith.constant 0 : index
    %1 = vector.load %arg2[%c0_1, %c0_2] : memref<32x64xf32, #tpu.memory_space<vmem>>, vector<32x64xf32>
    %cst = arith.constant dense<0.000000e+00> : vector<8x64xf32>
    %2 = tpu.matmul %0, %1, %cst {dimension_numbers = #tpu.dot_dimension_numbers<[1], [0], [0], [1], [0, 0, 1, 1], [], []>} : vector<8x32xf32>, vector<32x64xf32>, vector<8x64xf32> -> vector<8x64xf32>
    %c0_3 = arith.constant 0 : index
    %c0_4 = arith.constant 0 : index
    %3 = vector.load %arg3[%c0_3, %c0_4] : memref<1x64xf32, #tpu.memory_space<vmem>>, vector<1x64xf32>
    %4 = vector.broadcast %3 : vector<1x64xf32> to vector<8x64xf32>
    %5 = arith.addf %2, %4 : vector<8x64xf32>
    %6 = math.tanh %5 : vector<8x64xf32>
    %c0_5 = arith.constant 0 : index
    %c0_6 = arith.constant 0 : index
    %7 = vector.load %arg4[%c0_5, %c0_6] : memref<64x32xf32, #tpu.memory_space<vmem>>, vector<64x32xf32>
    %cst_7 = arith.constant dense<0.000000e+00> : vector<8x32xf32>
    %8 = tpu.matmul %6, %7, %cst_7 {dimension_numbers = #tpu.dot_dimension_numbers<[1], [0], [0], [1], [0, 0, 1, 1], [], []>} : vector<8x64xf32>, vector<64x32xf32>, vector<8x32xf32> -> vector<8x32xf32>
    %c0_8 = arith.constant 0 : index
    %c0_9 = arith.constant 0 : index
    %9 = vector.load %arg5[%c0_8, %c0_9] : memref<1x32xf32, #tpu.memory_space<vmem>>, vector<1x32xf32>
    %10 = vector.broadcast %9 : vector<1x32xf32> to vector<8x32xf32>
    %11 = arith.addf %8, %10 : vector<8x32xf32>
    %12 = math.tanh %11 : vector<8x32xf32>
    %c0_10 = arith.constant 0 : index
    %c0_11 = arith.constant 0 : index
    %13 = vector.load %arg6[%c0_10, %c0_11] : memref<1x32xf32, #tpu.memory_space<vmem>>, vector<1x32xf32>
    %14 = vector.broadcast %13 : vector<1x32xf32> to vector<8x32xf32>
    %15 = arith.mulf %12, %14 : vector<8x32xf32>
    %cst_12 = arith.constant dense<0.000000e+00> : vector<8xf32>
    %16 = vector.multi_reduction <add>, %15, %cst_12 [1] : vector<8x32xf32> to vector<8xf32>
    %17 = vector.shape_cast %16 : vector<8xf32> to vector<8x1xf32>
    %c0_13 = arith.constant 0 : index
    %c0_14 = arith.constant 0 : index
    %18 = vector.load %arg7[%c0_13, %c0_14] : memref<1x1xf32, #tpu.memory_space<vmem>>, vector<1x1xf32>
    %19 = vector.broadcast %18 : vector<1x1xf32> to vector<8x1xf32>
    %20 = arith.addf %17, %19 : vector<8x1xf32>
    %c0_15 = arith.constant 0 : index
    %c0_16 = arith.constant 0 : index
    %21 = vector.load %arg8[%c0_15, %c0_16] : memref<8x1xf32, #tpu.memory_space<vmem>>, vector<8x1xf32>
    tpu.vector_store %arg8[%c0_15, %c0_16], %20 {strides = array<i32>} : memref<8x1xf32, #tpu.memory_space<vmem>>, vector<8x1xf32>,
    return
  }
  func.func @transform_0(%arg0: i32) -> (i32, i32) {
    %c0_i32 = arith.constant 0 : i32
    %c0_i32_0 = arith.constant 0 : i32
    return %arg0, %c0_i32 : i32, i32
  }
  func.func @transform_1(%arg0: i32) -> (i32, i32) {
    %c0_i32 = arith.constant 0 : i32
    %c0_i32_0 = arith.constant 0 : i32
    %c0_i32_1 = arith.constant 0 : i32
    return %c0_i32, %c0_i32_0 : i32, i32
  }
  func.func @transform_2(%arg0: i32) -> (i32, i32) {
    %c0_i32 = arith.constant 0 : i32
    %c0_i32_0 = arith.constant 0 : i32
    %c0_i32_1 = arith.constant 0 : i32
    return %c0_i32, %c0_i32_0 : i32, i32
  }
  func.func @transform_3(%arg0: i32) -> (i32, i32) {
    %c0_i32 = arith.constant 0 : i32
    %c0_i32_0 = arith.constant 0 : i32
    %c0_i32_1 = arith.constant 0 : i32
    return %c0_i32, %c0_i32_0 : i32, i32
  }
  func.func @transform_4(%arg0: i32) -> (i32, i32) {
    %c0_i32 = arith.constant 0 : i32
    %c0_i32_0 = arith.constant 0 : i32
    %c0_i32_1 = arith.constant 0 : i32
    return %c0_i32, %c0_i32_0 : i32, i32
  }
  func.func @transform_5(%arg0: i32) -> (i32, i32) {
    %c0_i32 = arith.constant 0 : i32
    %c0_i32_0 = arith.constant 0 : i32
    %c0_i32_1 = arith.constant 0 : i32
    return %c0_i32, %c0_i32_0 : i32, i32
  }
  func.func @transform_6(%arg0: i32) -> (i32, i32) {
    %c0_i32 = arith.constant 0 : i32
    %c0_i32_0 = arith.constant 0 : i32
    %c0_i32_1 = arith.constant 0 : i32
    return %c0_i32, %c0_i32_0 : i32, i32
  }
  func.func @transform_7(%arg0: i32) -> (i32, i32) {
    %c0_i32 = arith.constant 0 : i32
    %c0_i32_0 = arith.constant 0 : i32
    return %arg0, %c0_i32 : i32, i32
  }
}

</mosaic_0001>

<llo_original>
// kernel: tpu_custom_call.1
$region0: #{tpu_custom_call.1}
  #allocation0 [shape = 'u32[]', space=smem, size = 0x4, offset = 0x4, fixed_abs, tag = 'smem constant byte address 0x4 - core index']
  #allocation1 [shape = 'u32[144,128]{1,0:T(1,128)}', space=vmem, size = 0x12000, scoped, tag = 'internal scratch']
  #allocation2 [shape = 'f32[1,1]{1,0:T(1,128)S(1)}', space=vmem, size = 0x200, scoped, tag = 'scoped memory for tpu_custom_call.1']
  %s0 = inlined_call_operand.vmem [shape: f32[16,32], index: 0, kind: input, shape index: {}]
  %s1 = inlined_call_operand.vmem [shape: f32[32,64], index: 1, kind: input, shape index: {}]
  %s2 = inlined_call_operand.vmem [shape: f32[1,64], index: 2, kind: input, shape index: {}]
  %s3 = inlined_call_operand.vmem [shape: f32[64,32], index: 3, kind: input, shape index: {}]
  %s4 = inlined_call_operand.vmem [shape: f32[1,32], index: 4, kind: input, shape index: {}]
  %s5 = inlined_call_operand.vmem [shape: f32[1,32], index: 5, kind: input, shape index: {}]
  %s6 = inlined_call_operand.<no memory space> [shape: f32[1,1], index: 6, kind: input, shape index: {}]
  %s7 = inlined_call_operand.vmem [shape: f32[16,1], index: 7, kind: output, shape index: {}]
  %s8 = sld [smem:[#allocation0]]
  $region61: #{tpu_custom_call.1} parent=0
    _
  %s10 = ssub.s32 1, %s8
  %s11 = scalar_select 0, %s10, %s8
  %v12 = vstv %s6
  %13 = vst [vmem:[#allocation2] sm:$0x1] %v12
  loop: start=0, step=1, limit=4
  $region2: #{tpu_custom_call.1} parent=0 // loop_pre_header
    _
  $region3: #{tpu_custom_call.1} parent=0 // loop_header
    %s15 = sphi 0, %s19
    %p16 = scmp.ge.s32.totalorder %s15, 4
    %s25 = sphi 0, %s27
    %s28 = sphi 0, %s25
    %s29 = sphi 0, %s28
    %s45 = sphi 0, %s29
    %s49 = sphi 0, %s49
    %s51 = sphi 0, %s49
    %s52 = sphi 0, %s51
    %s66 = sphi 0, %s52
    %s70 = sphi 0, %s70
    %s72 = sphi 0, %s70
    %s73 = sphi 0, %s72
    %s87 = sphi 0, %s73
    %s91 = sphi 0, %s91
    %s93 = sphi 0, %s91
    %s94 = sphi 0, %s93
    %s108 = sphi 0, %s94
    %s112 = sphi 0, %s112
    %s114 = sphi 0, %s112
    %s115 = sphi 0, %s114
    %s129 = sphi 0, %s115
    %s133 = sphi 0, %s133
    %s135 = sphi 0, %s133
    %s136 = sphi 0, %s135
    %s150 = sphi 0, %s136
    %s154 = sphi 0, %s154
    %s156 = sphi 0, %s154
    %s157 = sphi 0, %s156
    %s171 = sphi 0, %s157
    %s177 = sphi 0, %s179
    %s180 = sphi 0, %s177
    %s181 = sphi 0, %s180
    %s197 = sphi 0, %s181
  $region4: #{tpu_custom_call.1} parent=0 // loop_header_branch
    %18 = sbr.rel (%p16) target = $region8
  $region5: #{tpu_custom_call.1} parent=0 // loop_body
    %s20 = ssub.s32 %s15, 1
    %s21 = ssub.s32 %s15, 2
    %s22 = sadd.s32 %s15, 1
    %s23 = ssub.s32 %s15, %s22
    %p24 = scmp.eq.s32.totalorder %s23, 0
    %s26 = sadd.s32 %s25, 1
    %s27 = scalar_select %p24, %s25, %s26
    %p30 = pneg %p24
    %p31 = scmp.eq.s32.totalorder %s15, 1
    %p32 = por %p30, %p31
    %p33 = scmp.ne.s32.totalorder %s25, %s28
    %p34 = scmp.eq.s32.totalorder %s15, 0
    %p35 = por %p33, %p34
    %p36 = scmp.ne.s32.totalorder %s25, %s28
    %p37 = scmp.eq.s32.totalorder %s20, 1
    %p38 = por %p36, %p37
    %p39 = scmp.ne.s32.totalorder %s28, %s29
    %p40 = scmp.eq.s32.totalorder %s20, 0
    %p41 = por %p39, %p40
    %p42 = scmp.ne.s32.totalorder %s28, %s29
    %p43 = scmp.eq.s32.totalorder %s21, 1
    %p44 = por %p42, %p43
    %p46 = scmp.ne.s32.totalorder %s29, %s45
    %p47 = scmp.eq.s32.totalorder %s21, 0
    %p48 = por %p46, %p47
    %s50 = sadd.s32 %s49, 1
    %p53 = scmp.eq.s32.totalorder %s15, 1
    %p54 = scmp.ne.s32.totalorder %s49, %s51
    %p55 = scmp.eq.s32.totalorder %s15, 0
    %p56 = por %p54, %p55
    %p57 = scmp.ne.s32.totalorder %s49, %s51
    %p58 = scmp.eq.s32.totalorder %s20, 1
    %p59 = por %p57, %p58
    %p60 = scmp.ne.s32.totalorder %s51, %s52
    %p61 = scmp.eq.s32.totalorder %s20, 0
    %p62 = por %p60, %p61
    %p63 = scmp.ne.s32.totalorder %s51, %s52
    %p64 = scmp.eq.s32.totalorder %s21, 1
    %p65 = por %p63, %p64
    %p67 = scmp.ne.s32.totalorder %s52, %s66
    %p68 = scmp.eq.s32.totalorder %s21, 0
    %p69 = por %p67, %p68
    %s71 = sadd.s32 %s70, 1
    %p74 = scmp.eq.s32.totalorder %s15, 1
    %p75 = scmp.ne.s32.totalorder %s70, %s72
    %p76 = scmp.eq.s32.totalorder %s15, 0
    %p77 = por %p75, %p76
    %p78 = scmp.ne.s32.totalorder %s70, %s72
    %p79 = scmp.eq.s32.totalorder %s20, 1
    %p80 = por %p78, %p79
    %p81 = scmp.ne.s32.totalorder %s72, %s73
    %p82 = scmp.eq.s32.totalorder %s20, 0
    %p83 = por %p81, %p82
    %p84 = scmp.ne.s32.totalorder %s72, %s73
    %p85 = scmp.eq.s32.totalorder %s21, 1
    %p86 = por %p84, %p85
    %p88 = scmp.ne.s32.totalorder %s73, %s87
    %p89 = scmp.eq.s32.totalorder %s21, 0
    %p90 = por %p88, %p89
    %s92 = sadd.s32 %s91, 1
    %p95 = scmp.eq.s32.totalorder %s15, 1
    %p96 = scmp.ne.s32.totalorder %s91, %s93
    %p97 = scmp.eq.s32.totalorder %s15, 0
    %p98 = por %p96, %p97
    %p99 = scmp.ne.s32.totalorder %s91, %s93
    %p100 = scmp.eq.s32.totalorder %s20, 1
    %p101 = por %p99, %p100
    %p102 = scmp.ne.s32.totalorder %s93, %s94
    %p103 = scmp.eq.s32.totalorder %s20, 0
    %p104 = por %p102, %p103
    %p105 = scmp.ne.s32.totalorder %s93, %s94
    %p106 = scmp.eq.s32.totalorder %s21, 1
    %p107 = por %p105, %p106
    %p109 = scmp.ne.s32.totalorder %s94, %s108
    %p110 = scmp.eq.s32.totalorder %s21, 0
    %p111 = por %p109, %p110
    %s113 = sadd.s32 %s112, 1
    %p116 = scmp.eq.s32.totalorder %s15, 1
    %p117 = scmp.ne.s32.totalorder %s112, %s114
    %p118 = scmp.eq.s32.totalorder %s15, 0
    %p119 = por %p117, %p118
    %p120 = scmp.ne.s32.totalorder %s112, %s114
    %p121 = scmp.eq.s32.totalorder %s20, 1
    %p122 = por %p120, %p121
    %p123 = scmp.ne.s32.totalorder %s114, %s115
    %p124 = scmp.eq.s32.totalorder %s20, 0
    %p125 = por %p123, %p124
    %p126 = scmp.ne.s32.totalorder %s114, %s115
    %p127 = scmp.eq.s32.totalorder %s21, 1
    %p128 = por %p126, %p127
    %p130 = scmp.ne.s32.totalorder %s115, %s129
    %p131 = scmp.eq.s32.totalorder %s21, 0
    %p132 = por %p130, %p131
    %s134 = sadd.s32 %s133, 1
    %p137 = scmp.eq.s32.totalorder %s15, 1
    %p138 = scmp.ne.s32.totalorder %s133, %s135
    %p139 = scmp.eq.s32.totalorder %s15, 0
    %p140 = por %p138, %p139
    %p141 = scmp.ne.s32.totalorder %s133, %s135
    %p142 = scmp.eq.s32.totalorder %s20, 1
    %p143 = por %p141, %p142
    %p144 = scmp.ne.s32.totalorder %s135, %s136
    %p145 = scmp.eq.s32.totalorder %s20, 0
    %p146 = por %p144, %p145
    %p147 = scmp.ne.s32.totalorder %s135, %s136
    %p148 = scmp.eq.s32.totalorder %s21, 1
    %p149 = por %p147, %p148
    %p151 = scmp.ne.s32.totalorder %s136, %s150
    %p152 = scmp.eq.s32.totalorder %s21, 0
    %p153 = por %p151, %p152
    %s155 = sadd.s32 %s154, 1
    %p158 = scmp.eq.s32.totalorder %s15, 1
    %p159 = scmp.ne.s32.totalorder %s154, %s156
    %p160 = scmp.eq.s32.totalorder %s15, 0
    %p161 = por %p159, %p160
    %p162 = scmp.ne.s32.totalorder %s154, %s156
    %p163 = scmp.eq.s32.totalorder %s20, 1
    %p164 = por %p162, %p163
    %p165 = scmp.ne.s32.totalorder %s156, %s157
    %p166 = scmp.eq.s32.totalorder %s20, 0
    %p167 = por %p165, %p166
    %p168 = scmp.ne.s32.totalorder %s156, %s157
    %p169 = scmp.eq.s32.totalorder %s21, 1
    %p170 = por %p168, %p169
    %p172 = scmp.ne.s32.totalorder %s157, %s171
    %p173 = scmp.eq.s32.totalorder %s21, 0
    %p174 = por %p172, %p173
    %s175 = ssub.s32 %s15, %s22
    %p176 = scmp.eq.s32.totalorder %s175, 0
    %s178 = sadd.s32 %s177, 1
    %s179 = scalar_select %p176, %s177, %s178
    %p182 = pneg %p176
    %p183 = scmp.eq.s32.totalorder %s15, 1
    %p184 = por %p182, %p183
    %p185 = scmp.ne.s32.totalorder %s177, %s180
    %p186 = scmp.eq.s32.totalorder %s15, 0
    %p187 = por %p185, %p186
    %p188 = scmp.ne.s32.totalorder %s177, %s180
    %p189 = scmp.eq.s32.totalorder %s20, 1
    %p190 = por %p188, %p189
    %p191 = scmp.ne.s32.totalorder %s180, %s181
    %p192 = scmp.eq.s32.totalorder %s20, 0
    %p193 = por %p191, %p192
    %p194 = scmp.ne.s32.totalorder %s180, %s181
    %p195 = scmp.eq.s32.totalorder %s21, 1
    %p196 = por %p194, %p195
    %p198 = scmp.ne.s32.totalorder %s181, %s197
    %p199 = scmp.eq.s32.totalorder %s21, 0
    %p200 = por %p198, %p199
    %p201 = scmp.le.s32.totalorder 1, %s15
    %p202 = scmp.lt.s32.totalorder %s15, 3
    %p203 = pnand %p201, %p202
    %p204 = pneg %p203
    // Predicated region
    $region9: #{tpu_custom_call.1} parent=5 // pred_check
      _
    $region10: #{tpu_custom_call.1} parent=5 // pred_check_branch
      %206 = sbr.rel (%p203) target = $region12
    $region11: #{tpu_custom_call.1} parent=5 // pred_region
      %s207 = ssub.s32 %s15, 1
      // Predicated region
      $region13: #{tpu_custom_call.1} parent=11 // pred_check
        %p208 = pneg %p62
      $region14: #{tpu_custom_call.1} parent=11 // pred_check_branch
        %210 = sbr.rel (%p208) target = $region16
      $region15: #{tpu_custom_call.1} parent=11 // pred_region
        _
      $region16: #{tpu_custom_call.1} parent=11 // pred_fallthru
        _
      // Predicated region
      $region17: #{tpu_custom_call.1} parent=11 // pred_check
        %p211 = pneg %p83
      $region18: #{tpu_custom_call.1} parent=11 // pred_check_branch
        %213 = sbr.rel (%p211) target = $region20
      $region19: #{tpu_custom_call.1} parent=11 // pred_region
        _
      $region20: #{tpu_custom_call.1} parent=11 // pred_fallthru
        _
      // Predicated region
      $region21: #{tpu_custom_call.1} parent=11 // pred_check
        %p214 = pneg %p104
      $region22: #{tpu_custom_call.1} parent=11 // pred_check_branch
        %216 = sbr.rel (%p214) target = $region24
      $region23: #{tpu_custom_call.1} parent=11 // pred_region
        _
      $region24: #{tpu_custom_call.1} parent=11 // pred_fallthru
        _
      // Predicated region
      $region25: #{tpu_custom_call.1} parent=11 // pred_check
        %p217 = pneg %p125
      $region26: #{tpu_custom_call.1} parent=11 // pred_check_branch
        %219 = sbr.rel (%p217) target = $region28
      $region27: #{tpu_custom_call.1} parent=11 // pred_region
        _
      $region28: #{tpu_custom_call.1} parent=11 // pred_fallthru
        _
      // Predicated region
      $region29: #{tpu_custom_call.1} parent=11 // pred_check
        %p220 = pneg %p146
      $region30: #{tpu_custom_call.1} parent=11 // pred_check_branch
        %222 = sbr.rel (%p220) target = $region32
      $region31: #{tpu_custom_call.1} parent=11 // pred_region
        _
      $region32: #{tpu_custom_call.1} parent=11 // pred_fallthru
        _
      // Predicated region
      $region33: #{tpu_custom_call.1} parent=11 // pred_check
        %p223 = pneg %p167
      $region34: #{tpu_custom_call.1} parent=11 // pred_check_branch
        %225 = sbr.rel (%p223) target = $region36
      $region35: #{tpu_custom_call.1} parent=11 // pred_region
        _
      $region36: #{tpu_custom_call.1} parent=11 // pred_fallthru
        _
    $region12: #{tpu_custom_call.1} parent=5 // pred_fallthru
      _
    %p226 = scmp.lt.s32.totalorder %s15, 2
    // Predicated region
    $region37: #{tpu_custom_call.1} parent=5 // pred_check
      %p227 = pneg %p226
    $region38: #{tpu_custom_call.1} parent=5 // pred_check_branch
      %229 = sbr.rel (%p227) target = $region40
    $region39: #{tpu_custom_call.1} parent=5 // pred_region
      // Predicated region
      $region41: #{tpu_custom_call.1} parent=39 // pred_check
        %p230 = pneg %p35
      $region42: #{tpu_custom_call.1} parent=39 // pred_check_branch
        %232 = sbr.rel (%p230) target = $region44
      $region43: #{tpu_custom_call.1} parent=39 // pred_region
        %p233 = scmp.lt.s32.totalorder %s15, 1
        %s234 = scalar_select %p233, %s15, 1
        %s235 = smul.addr %s234, 8
        %s236 = scalar_lea.vmem %s0, %s235
      $region44: #{tpu_custom_call.1} parent=39 // pred_fallthru
        _
    $region40: #{tpu_custom_call.1} parent=5 // pred_fallthru
      _
    %p237 = scmp.le.s32.totalorder 1, %s15
    %p238 = scmp.lt.s32.totalorder %s15, 3
    %p239 = pnand %p237, %p238
    %p240 = pneg %p239
    // Predicated region
    $region45: #{tpu_custom_call.1} parent=5 // pred_check
      _
    $region46: #{tpu_custom_call.1} parent=5 // pred_check_branch
      %242 = sbr.rel (%p239) target = $region48
    $region47: #{tpu_custom_call.1} parent=5 // pred_region
      %s243 = ssub.s32 %s15, 1
      %p244 = scmp.lt.s32.totalorder %s20, 1
      %s245 = scalar_select %p244, %s20, 1
      %s246 = smul.addr %s245, 8
      %s247 = scalar_lea.vmem %s0, %s246
      %p248 = pneg %p41
      %p249 = pneg %p38
      %p250 = pneg %p62
      %p251 = pneg %p59
      %p252 = pneg %p83
      %p253 = pneg %p80
      %p254 = pneg %p104
      %p255 = pneg %p101
      %p256 = pneg %p125
      %p257 = pneg %p122
      %p258 = pneg %p146
      %p259 = pneg %p143
      %p260 = pneg %p167
      %p261 = pneg %p164
      %p262 = pneg %p193
      %p263 = pneg %p190
      %p264 = scmp.lt.s32.totalorder %s20, 1
      %s265 = scalar_select %p264, %s20, 1
      %s266 = smul.addr %s265, 8
      %s267 = scalar_lea.vmem %s7, %s266
      %p268 = scmp.lt.s32.totalorder %s20, 1
      %s269 = scalar_select %p268, %s20, 1
      %s270 = smul.addr %s269, 8
      %s271 = scalar_lea.vmem %s0, %s270
      %p272 = scmp.lt.s32.totalorder %s20, 1
      %s273 = scalar_select %p272, %s20, 1
      %s274 = smul.addr %s273, 8
      %s275 = scalar_lea.vmem %s7, %s274
      %v276 = vld [vmem:[%s271] sm:$0xff]
      %v277 = vld [vmem:[%s1] sm:$0xff]
      %v278 = vld [vmem:[%s1 + $0x8] sm:$0xff]
      %v279 = vld [vmem:[%s1 + $0x10] sm:$0xff]
      %v280 = vld [vmem:[%s1 + $0x18] sm:$0xff]
      %v281 = vld [vmem:[%s2] sm:$0x1]
      %v283 = vlaneseq
      %v284 = vshrl.u32 %v283, 7
      %v285 = vsub.s32 0, %v284
      %v286 = vrot.slane %v281, %v285
      %vm288 = vcmask 261120
      %v290 = vsel %vm288, %v276, 0
      %292 = vmatprep.subr.mxu0 0.0
      %293 = vmatpush1.msra.mxu0 %v277
      %294 = vmatprep.subr.mxu0 0.0
      %295 = vmatpush1.msra.mxu0 %v278
      %296 = vmatprep.subr.mxu0 0.0
      %297 = vmatpush1.msra.mxu0 %v279
      %298 = vmatprep.subr.mxu0 0.0
      %299 = vmatpush1.msra.mxu0 %v280
      %300 = vmatprep.subr.mxu0 0.0
      %301 = vmatpush1.msra.mxu0 0.0
      %302 = vmatprep.subr.mxu0 0.0
      %303 = vmatpush1.msra.mxu0 0.0
      %304 = vmatprep.subr.mxu0 0.0
      %305 = vmatpush1.msra.mxu0 0.0
      %306 = vmatprep.subr.mxu0 0.0
      %307 = vmatpush1.msra.mxu0 0.0
      %308 = vmatprep.subr.mxu0 0.0
      %309 = vmatpush1.msra.mxu0 0.0
      %310 = vmatprep.subr.mxu0 0.0
      %311 = vmatpush1.msra.mxu0 0.0
      %312 = vmatprep.subr.mxu0 0.0
      %313 = vmatpush1.msra.mxu0 0.0
      %314 = vmatprep.subr.mxu0 0.0
      %315 = vmatpush1.msra.mxu0 0.0
      %316 = vmatprep.subr.mxu0 0.0
      %317 = vmatpush1.msra.mxu0 0.0
      %318 = vmatprep.subr.mxu0 0.0
      %319 = vmatpush1.msra.mxu0 0.0
      %320 = vmatprep.subr.mxu0 0.0
      %321 = vmatpush1.msra.mxu0 0.0
      %322 = vmatprep.subr.mxu0 0.0
      %323 = vmatpush1.msra.mxu0 0.0
      %324 = vmatprep.subr.mxu0 0.0
      %325 = vmatpush1.msra.mxu0 0.0
      %326 = vmatprep.subr.mxu0 0.0
      %327 = vmatpush1.msra.mxu0 0.0
      %328 = vmatprep.subr.mxu0 0.0
      %329 = vmatpush1.msra.mxu0 0.0
      %330 = vmatprep.subr.mxu0 0.0
      %331 = vmatpush1.msra.mxu0 0.0
      %332 = vmatprep.subr.mxu0 0.0
      %333 = vmatpush1.msra.mxu0 0.0
      %334 = vmatprep.subr.mxu0 0.0
      %335 = vmatpush1.msra.mxu0 0.0
      %336 = vmatprep.subr.mxu0 0.0
      %337 = vmatpush1.msra.mxu0 0.0
      %338 = vmatprep.subr.mxu0 0.0
      %339 = vmatpush1.msra.mxu0 0.0
      %340 = vmatprep.subr.mxu0 0.0
      %341 = vmatpush1.msra.mxu0 0.0
      %342 = vmatprep.subr.mxu0 0.0
      %343 = vmatpush1.msra.mxu0 0.0
      %344 = vmatprep.subr.mxu0 0.0
      %345 = vmatpush1.msra.mxu0 0.0
      %346 = vmatprep.subr.mxu0 0.0
      %347 = vmatpush1.msra.mxu0 0.0
      %348 = vmatprep.subr.mxu0 0.0
      %349 = vmatpush1.msra.mxu0 0.0
      %350 = vmatprep.subr.mxu0 0.0
      %351 = vmatpush1.msra.mxu0 0.0
      %352 = vmatprep.subr.mxu0 0.0
      %353 = vmatpush1.msra.mxu0 0.0
      %354 = vmatprep.subr.mxu0 0.0
      %355 = vmatpush1.msra.mxu0 0.0
      %356 = vmatprep.mubr.f32.mxu0 0.0
      %357 = vmatmul.mubr.f32.gmra.mrb[0].mxu0 %v290
      %v358 = vpop.f32.mrb[0].mxu0
      %v359 = vadd.f32 %v286, %v358
      %v360 = vpop.f32.mrb[0].mxu0
      %361 = vdwg.mxu0
      %v362 = vtanh.pop %v359
      %v363 = vld [vmem:[%s3] sm:$0xff]
      %v364 = vld [vmem:[%s3 + $0x8] sm:$0xff]
      %v365 = vld [vmem:[%s3 + $0x10] sm:$0xff]
      %v366 = vld [vmem:[%s3 + $0x18] sm:$0xff]
      %v367 = vld [vmem:[%s3 + $0x20] sm:$0xff]
      %v368 = vld [vmem:[%s3 + $0x28] sm:$0xff]
      %v369 = vld [vmem:[%s3 + $0x30] sm:$0xff]
      %v370 = vld [vmem:[%s3 + $0x38] sm:$0xff]
      %v371 = vld [vmem:[%s4] sm:$0x1]
      %v373 = vlaneseq
      %v374 = vshrl.u32 %v373, 7
      %v375 = vsub.s32 0, %v374
      %v376 = vrot.slane %v371, %v375
      %vm378 = vcmask 523264
      %v380 = vsel %vm378, %v362, 0
      %382 = vmatprep.subr.mxu0 0.0
      %383 = vmatpush1.msra.mxu0 %v363
      %384 = vmatprep.subr.mxu0 0.0
      %385 = vmatpush1.msra.mxu0 %v364
      %386 = vmatprep.subr.mxu0 0.0
      %387 = vmatpush1.msra.mxu0 %v365
      %388 = vmatprep.subr.mxu0 0.0
      %389 = vmatpush1.msra.mxu0 %v366
      %390 = vmatprep.subr.mxu0 0.0
      %391 = vmatpush1.msra.mxu0 %v367
      %392 = vmatprep.subr.mxu0 0.0
      %393 = vmatpush1.msra.mxu0 %v368
      %394 = vmatprep.subr.mxu0 0.0
      %395 = vmatpush1.msra.mxu0 %v369
      %396 = vmatprep.subr.mxu0 0.0
      %397 = vmatpush1.msra.mxu0 %v370
      %398 = vmatprep.subr.mxu0 0.0
      %399 = vmatpush1.msra.mxu0 0.0
      %400 = vmatprep.subr.mxu0 0.0
      %401 = vmatpush1.msra.mxu0 0.0
      %402 = vmatprep.subr.mxu0 0.0
      %403 = vmatpush1.msra.mxu0 0.0
      %404 = vmatprep.subr.mxu0 0.0
      %405 = vmatpush1.msra.mxu0 0.0
      %406 = vmatprep.subr.mxu0 0.0
      %407 = vmatpush1.msra.mxu0 0.0
      %408 = vmatprep.subr.mxu0 0.0
      %409 = vmatpush1.msra.mxu0 0.0
      %410 = vmatprep.subr.mxu0 0.0
      %411 = vmatpush1.msra.mxu0 0.0
      %412 = vmatprep.subr.mxu0 0.0
      %413 = vmatpush1.msra.mxu0 0.0
      %414 = vmatprep.subr.mxu0 0.0
      %415 = vmatpush1.msra.mxu0 0.0
      %416 = vmatprep.subr.mxu0 0.0
      %417 = vmatpush1.msra.mxu0 0.0
      %418 = vmatprep.subr.mxu0 0.0
      %419 = vmatpush1.msra.mxu0 0.0
      %420 = vmatprep.subr.mxu0 0.0
      %421 = vmatpush1.msra.mxu0 0.0
      %422 = vmatprep.subr.mxu0 0.0
      %423 = vmatpush1.msra.mxu0 0.0
      %424 = vmatprep.subr.mxu0 0.0
      %425 = vmatpush1.msra.mxu0 0.0
      %426 = vmatprep.subr.mxu0 0.0
      %427 = vmatpush1.msra.mxu0 0.0
      %428 = vmatprep.subr.mxu0 0.0
      %429 = vmatpush1.msra.mxu0 0.0
      %430 = vmatprep.subr.mxu0 0.0
      %431 = vmatpush1.msra.mxu0 0.0
      %432 = vmatprep.subr.mxu0 0.0
      %433 = vmatpush1.msra.mxu0 0.0
      %434 = vmatprep.subr.mxu0 0.0
      %435 = vmatpush1.msra.mxu0 0.0
      %436 = vmatprep.subr.mxu0 0.0
      %437 = vmatpush1.msra.mxu0 0.0
      %438 = vmatprep.subr.mxu0 0.0
      %439 = vmatpush1.msra.mxu0 0.0
      %440 = vmatprep.subr.mxu0 0.0
      %441 = vmatpush1.msra.mxu0 0.0
      %442 = vmatprep.subr.mxu0 0.0
      %443 = vmatpush1.msra.mxu0 0.0
      %444 = vmatprep.subr.mxu0 0.0
      %445 = vmatpush1.msra.mxu0 0.0
      %446 = vmatprep.mubr.f32.mxu0 0.0
      %447 = vmatmul.mubr.f32.gmra.mrb[0].mxu0 %v380
      %v448 = vpop.f32.mrb[0].mxu0
      %v449 = vadd.f32 %v376, %v448
      %v450 = vpop.f32.mrb[0].mxu0
      %451 = vdwg.mxu0
      %v452 = vtanh.pop %v449
      %v453 = vld [vmem:[%s5] sm:$0x1]
      %v455 = vlaneseq
      %v456 = vshrl.u32 %v455, 7
      %v457 = vsub.s32 0, %v456
      %v458 = vrot.slane %v453, %v457
      %v460 = vmul.f32 %v452, %v458
      %v461 = vsel %vm288, %v460, 0.0
      %462 = vadd.xlane.f32.xlu0 %v461
      %v463 = vpop.xlane.xlu0 %462
      %v464 = vld [vmem:[#allocation2] sm:$0x1]
      %v466 = vlaneseq
      %v467 = vshrl.u32 %v466, 7
      %v468 = vsub.s32 0, %v467
      %v469 = vrot.slane %v464, %v468
      %v471 = vadd.f32 %v463, %v469
      %vm472 = vcmask 7168
      %473 = vst.msk [vmem:[%s275] sm:$0xff] %vm472, %v471
      %p474 = scmp.lt.s32.totalorder %s20, 1
      %s475 = scalar_select %p474, %s20, 1
      %s476 = smul.addr %s475, 8
      %s477 = scalar_lea.vmem %s7, %s476
      // Predicated region
      $region49: #{tpu_custom_call.1} parent=47 // pred_check
        %p478 = pneg %p190
      $region50: #{tpu_custom_call.1} parent=47 // pred_check_branch
        %480 = sbr.rel (%p478) target = $region52
      $region51: #{tpu_custom_call.1} parent=47 // pred_region
        _
      $region52: #{tpu_custom_call.1} parent=47 // pred_fallthru
        _
    $region48: #{tpu_custom_call.1} parent=5 // pred_fallthru
      _
    %p481 = scmp.le.s32.totalorder 2, %s15
    // Predicated region
    $region53: #{tpu_custom_call.1} parent=5 // pred_check
      %p482 = pneg %p481
    $region54: #{tpu_custom_call.1} parent=5 // pred_check_branch
      %484 = sbr.rel (%p482) target = $region56
    $region55: #{tpu_custom_call.1} parent=5 // pred_region
      %s485 = ssub.s32 %s15, 2
      // Predicated region
      $region57: #{tpu_custom_call.1} parent=55 // pred_check
        %p486 = pneg %p196
      $region58: #{tpu_custom_call.1} parent=55 // pred_check_branch
        %488 = sbr.rel (%p486) target = $region60
      $region59: #{tpu_custom_call.1} parent=55 // pred_region
        %p489 = scmp.lt.s32.totalorder %s21, 1
        %s490 = scalar_select %p489, %s21, 1
        %s491 = smul.addr %s490, 8
        %s492 = scalar_lea.vmem %s7, %s491
      $region60: #{tpu_custom_call.1} parent=55 // pred_fallthru
        _
    $region56: #{tpu_custom_call.1} parent=5 // pred_fallthru
      _
  $region6: #{tpu_custom_call.1} parent=0 // loop_footer
    %s19 = sadd.s32 1, %s15
  $region7: #{tpu_custom_call.1} parent=0 // loop_footer_branch
    %14 = sbr.rel target = $region3
  $region8: #{tpu_custom_call.1} parent=0 // loop_exit
    _

</llo_original>
